<compile_context>
chip_gen: v6e
topology: v6e:2x2x1
jax: 0.10.0
libtpu: 0.0.40
codegen_flags: <defaults>
</compile_context>

<pallas_src>
import functools

import jax
import jax.numpy as jnp
import numpy as np
from jax.experimental import pallas as pl
from jax.experimental.pallas import tpu as pltpu

_LANES = 128
_VMEM_TILE_BUDGET = 28 * 1024 * 1024   # bytes for tiles + acc + temporaries
_VMEM_LIMIT_CAP = 48 * 1024 * 1024     # <= v7x's 64 MiB physical VMEM


def _focal_loss_kernel(x_ref, t_ref, out_ref, acc_ref, *,
                       c, gamma, hw, ts, tiles_per_split, alpha_vals,
                       needs_mask):
    sp = pl.program_id(1)     # pixel-split index ("parallel": 2nd v7x TC)
    j = pl.program_id(2)      # reduction step within this split ("arbitrary")

    @pl.when(j == 0)
    def _():
        acc_ref[...] = jnp.zeros_like(acc_ref)

    t = t_ref[0, 0]           # (ts, 128) int32 targets

    # Numerically stable log-softmax over the class axis.  Classes are a
    # *leading* (non-vreg) dim, so max / sum below are C-1 elementwise ops on
    # dense (ts, 128) planes -- no cross-sublane XLU work in the hot loop.
    m = x_ref[0, 0].astype(jnp.float32)
    for k in range(1, c):
        m = jnp.maximum(m, x_ref[0, k].astype(jnp.float32))

    den = None                # sum_k exp(x_k - m)
    xt = None                 # x[target]   (one-hot select, no dynamic gather)
    at = None                 # alpha[target]
    for k in range(c):
        xk = x_ref[0, k].astype(jnp.float32)
        ek = jnp.exp(xk - m)
        den = ek if den is None else den + ek
        sel = t == k
        xt = jnp.where(sel, xk, 0.0 if xt is None else xt)
        if alpha_vals is not None:
            ak = jnp.float32(alpha_vals[k])
            at = jnp.where(sel, ak, 0.0 if at is None else at)

    # log p_t without materializing the full (C, ts, 128) log-softmax.
    logpt = (xt - m) - jnp.log(den)            # (ts, 128)
    pt = jnp.exp(logpt)
    if alpha_vals is not None:
        logpt = logpt * at

    # Focal modulation (1 - pt) ** gamma, specialized for integer gamma.
    g = float(gamma)
    if g == 0.0:
        loss = -logpt
    elif g.is_integer() and 0.0 < g <= 8.0:
        omp = 1.0 - pt
        mod = omp
        for _ in range(int(g) - 1):
            mod = mod * omp
        loss = -mod * logpt
    else:
        # exp/log path (exact for pt < 1; -> 0 at pt == 1 since gamma > 0).
        mod = jnp.where(pt >= 1.0, 0.0,
                        jnp.exp(jnp.float32(g) *
                                jnp.log(jnp.maximum(1.0 - pt, 1e-38))))
        loss = -mod * logpt

    # NOTE: out-of-range target labels (e.g. ignore_index=255) contribute 0 to
    # the sum (logpt=0 -> pt=1 -> loss=0) but still count in the size_average
    # denominator; PyTorch's gather would raise instead.

    if needs_mask:
        # Global index of this pixel tile (unclamped; duplicated tiles from an
        # uneven 2-way split land past the last real tile and mask to zero).
        tile_idx = sp * tiles_per_split + j
        fully_valid = tile_idx < (hw // (ts * _LANES))

        @pl.when(fully_valid)
        def _():
            acc_ref[...] += loss

        @pl.when(jnp.logical_not(fully_valid))
        def _():
            row = jax.lax.broadcasted_iota(jnp.int32, (ts, _LANES), 0)
            lane = jax.lax.broadcasted_iota(jnp.int32, (ts, _LANES), 1)
            pix = (tile_idx * ts + row) * _LANES + lane
            acc_ref[...] += jnp.where(pix < hw, loss, 0.0)
    else:
        acc_ref[...] += loss

    @pl.when(j == pl.num_programs(2) - 1)
    def _():
        part = jnp.sum(acc_ref[...], axis=0, keepdims=True)      # (1, 128)
        out_ref[0, 0] = jnp.sum(part, axis=1, keepdims=True)     # (1, 1)


def focal_loss_pallas(x, target, *, gamma=0.0, alpha=None, size_average=True,
                      block_rows=None):
    """Focal loss matching PyTorch FocalLoss.forward.

    x:      (N, C, *spatial) float logits (f32 or bf16, used as-is).
    target: (N, *spatial) integer class indices in [0, C).
    Returns a float32 scalar.
    """
    gamma = float(gamma)
    if gamma < 0.0:
        raise ValueError("focal loss requires gamma >= 0")

    n, c = int(x.shape[0]), int(x.shape[1])
    hw = 1
    for d in x.shape[2:]:
        hw *= int(d)

    # alpha handling (mirrors the PyTorch constructor: float/int -> [a, 1-a]).
    if alpha is None:
        alpha_vals = None
    elif isinstance(alpha, (float, int)) and not isinstance(alpha, bool):
        if c != 2:
            raise ValueError("scalar alpha implies a 2-class problem")
        alpha_vals = (float(alpha), 1.0 - float(alpha))
    else:
        a = np.asarray(alpha, dtype=np.float32).reshape(-1)
        if a.shape[0] != c:
            raise ValueError("alpha must have one weight per class")
        alpha_vals = tuple(float(v) for v in a)

    # Metadata-only reshapes; logits keep their dtype (bf16 stays bf16, halving
    # HBM traffic -- the kernel casts to f32 internally).  Targets -> int32
    # (no-op if already int32; required for int64 / safe layout for int8).
    x3 = x.reshape(n, c, hw)
    t3 = target.reshape(n, 1, hw).astype(jnp.int32)

    # Pixel-dense layout: HW -> (S, 128).  Pad only when HW % 128 != 0
    # (uncommon); padded pixels are masked out inside the kernel.
    hw_pad = ((hw + _LANES - 1) // _LANES) * _LANES
    if hw_pad != hw:
        x3 = jnp.pad(x3, ((0, 0), (0, 0), (0, hw_pad - hw)))
        t3 = jnp.pad(t3, ((0, 0), (0, 0), (0, hw_pad - hw)))
    s_rows = hw_pad // _LANES
    x4 = x3.reshape(n, c, s_rows, _LANES)
    t4 = t3.reshape(n, 1, s_rows, _LANES)

    # Row-tile sizing from a VMEM byte budget (no artificial lane cap).
    isz = jnp.dtype(x.dtype).itemsize
    gran = {4: 8, 2: 16, 1: 32}.get(isz, 8)   # sublane granularity per dtype
    # Bytes per row of S: double-buffered logits + double-buffered int32
    # targets + f32 accumulator + ~8 f32 elementwise temporaries.
    per_row = _LANES * (2 * c * isz + 2 * 4 + 4 + 8 * 4)
    if block_rows is not None:
        ts = s_rows if block_rows >= s_rows else max(
            gran, (block_rows // gran) * gran)
    elif s_rows <= gran:
        ts = s_rows
    else:
        ts_budget = max(gran, (_VMEM_TILE_BUDGET // per_row) // gran * gran)
        if s_rows >= 2 * gran:
            # Cap so there are >= 2 pixel tiles -> both v7x TCs get work.
            ts_cap = ((pl.cdiv(s_rows, 2) + gran - 1) // gran) * gran
        else:
            ts_cap = s_rows
        ts = min(ts_budget, ts_cap)

    tiles = pl.cdiv(s_rows, ts)
    n_split = 2 if tiles >= 2 else 1          # v7x: one chunk per TensorCore
    tps = pl.cdiv(tiles, n_split)
    needs_mask = (n_split * tps * ts * _LANES) != hw

    # VMEM limit derived from the actual buffers (+slack), capped for v7x.
    vmem_limit = int(max(16 << 20,
                         min(_VMEM_LIMIT_CAP, ts * per_row + (4 << 20))))

    if n_split * tps == tiles:
        def pix_map(i, s, j):
            return (i, 0, s * tps + j, 0)
    else:
        def pix_map(i, s, j):
            return (i, 0, jnp.minimum(s * tps + j, tiles - 1), 0)

    kernel = functools.partial(
        _focal_loss_kernel, c=c, gamma=gamma, hw=hw, ts=ts,
        tiles_per_split=tps, alpha_vals=alpha_vals, needs_mask=needs_mask)

    partial_sums = pl.pallas_call(
        kernel,
        out_shape=jax.ShapeDtypeStruct((n, n_split, 1, 1), jnp.float32),
        grid_spec=pltpu.PrefetchScalarGridSpec(
            num_scalar_prefetch=0,
            grid=(n, n_split, tps),
            in_specs=[
                pl.BlockSpec((1, c, ts, _LANES), pix_map),
                pl.BlockSpec((1, 1, ts, _LANES), pix_map),
            ],
            out_specs=pl.BlockSpec((1, 1, 1, 1), lambda i, s, j: (i, s, 0, 0)),
            scratch_shapes=[pltpu.VMEM((ts, _LANES), jnp.float32)],
        ),
        compiler_params=pltpu.CompilerParams(
            dimension_semantics=("parallel", "parallel", "arbitrary"),
            vmem_limit_bytes=vmem_limit),
    )(x4, t4)

    total = jnp.sum(partial_sums)
    if size_average:
        total = total / jnp.float32(n * hw)
    return total


def _focal_loss_ref(x_nchw, target_nhw, *, gamma, alpha, size_average):
    """Pure-JAX reference (mirrors the PyTorch module) for verification."""
    n, c, h, w = x_nchw.shape
    x2d = jnp.transpose(x_nchw.reshape(n, c, h * w), (0, 2, 1)).reshape(-1, c)
    t = target_nhw.reshape(-1).astype(jnp.int32)
    logp = jax.nn.log_softmax(x2d.astype(jnp.float32), axis=1)
    logpt = jnp.take_along_axis(logp, t[:, None], axis=1)[:, 0]
    pt = jnp.exp(logpt)
    if alpha is not None:
        if isinstance(alpha, (float, int)):
            a = jnp.array([float(alpha), 1.0 - float(alpha)], jnp.float32)
        else:
            a = jnp.asarray(alpha, dtype=jnp.float32)
        logpt = logpt * a[t]
    loss = -1.0 * (1.0 - pt) ** gamma * logpt
    return loss.mean() if size_average else loss.sum()


if __name__ == "__main__":
    key = jax.random.PRNGKey(0)
    k1, k2, k3, k4, k5, k6, k7, k8 = jax.random.split(key, 8)

    # Case 1: segmentation-style NCHW logits, list alpha, gamma=2, mean.
    x = jax.random.normal(k1, (2, 4, 16, 16), dtype=jnp.float32)
    t = jax.random.randint(k2, (2, 16, 16), 0, 4, dtype=jnp.int32)
    out = jax.block_until_ready(focal_loss_pallas(
        x, t, gamma=2.0, alpha=[0.1, 0.2, 0.3, 0.4], size_average=True))
    ref = _focal_loss_ref(x, t, gamma=2.0, alpha=[0.1, 0.2, 0.3, 0.4],
                          size_average=True)
    assert jnp.allclose(out, ref, rtol=1e-5, atol=1e-6), (out, ref)

    # Case 2: no alpha, gamma=0 (plain NLL), sum reduction.
    out = jax.block_until_ready(focal_loss_pallas(
        x, t, gamma=0.0, alpha=None, size_average=False))
    ref = _focal_loss_ref(x, t, gamma=0.0, alpha=None, size_average=False)
    assert jnp.allclose(out, ref, rtol=1e-5, atol=1e-5), (out, ref)

    # Case 3: 2-class scalar alpha, ragged HW (324 % 128 != 0) -> pad + mask.
    x3 = jax.random.normal(k3, (1, 2, 18, 18), dtype=jnp.float32)
    t3 = jax.random.randint(k4, (1, 18, 18), 0, 2, dtype=jnp.int32)
    out = jax.block_until_ready(focal_loss_pallas(
        x3, t3, gamma=2.0, alpha=0.25, size_average=True))
    ref = _focal_loss_ref(x3, t3, gamma=2.0, alpha=0.25, size_average=True)
    assert jnp.allclose(out, ref, rtol=1e-5, atol=1e-6), (out, ref)

    # Case 4: larger HW -> 2-way pixel split (v7x TC axis) + partial row tile.
    x4a = jax.random.normal(k5, (2, 3, 48, 48), dtype=jnp.float32)
    t4a = jax.random.randint(k6, (2, 48, 48), 0, 3, dtype=jnp.int32)
    out = jax.block_until_ready(focal_loss_pallas(
        x4a, t4a, gamma=2.0, alpha=[0.2, 0.3, 0.5], size_average=True))
    ref = _focal_loss_ref(x4a, t4a, gamma=2.0, alpha=[0.2, 0.3, 0.5],
                          size_average=True)
    assert jnp.allclose(out, ref, rtol=1e-5, atol=1e-5), (out, ref)

    # Case 5: bf16 logits kept narrow across HBM, split grid, no masking.
    x5 = jax.random.normal(k7, (1, 4, 64, 64), dtype=jnp.bfloat16)
    t5 = jax.random.randint(k8, (1, 64, 64), 0, 4, dtype=jnp.int32)
    out = jax.block_until_ready(focal_loss_pallas(
        x5, t5, gamma=2.0, alpha=[0.1, 0.2, 0.3, 0.4], size_average=True))
    ref = _focal_loss_ref(x5, t5, gamma=2.0, alpha=[0.1, 0.2, 0.3, 0.4],
                          size_average=True)
    assert jnp.allclose(out, ref, rtol=1e-5, atol=1e-5), (out, ref)

    # Case 6: forced small row-tile -> odd tile count, uneven 2-way split with
    # a clamped duplicate tile that must mask to zero.
    kx6, kt6 = jax.random.split(jax.random.PRNGKey(1))
    x6 = jax.random.normal(kx6, (1, 2, 40, 64), dtype=jnp.float32)
    t6 = jax.random.randint(kt6, (1, 40, 64), 0, 2, dtype=jnp.int32)
    out = jax.block_until_ready(focal_loss_pallas(
        x6, t6, gamma=2.0, alpha=0.25, size_average=False, block_rows=8))
    ref = _focal_loss_ref(x6, t6, gamma=2.0, alpha=0.25, size_average=False)
    assert jnp.allclose(out, ref, rtol=1e-5, atol=1e-4), (out, ref)

    print("KERNEL_OK")
</pallas_src>

<mosaic_0001>
module attributes {stable_mosaic.version = 11 : i64} {
  func.func @_focal_loss_kernel(%arg0: i32, %arg1: i32, %arg2: i32, %arg3: memref<1x4x2x128xf32, #tpu.memory_space<vmem>>, %arg4: memref<1x1x2x128xi32, #tpu.memory_space<vmem>>, %arg5: memref<1x1x1x1xf32, #tpu.memory_space<vmem>>, %arg6: memref<2x128xf32, #tpu.memory_space<vmem>>) attributes {dimension_semantics = [#tpu.dimension_semantics<parallel>, #tpu.dimension_semantics<parallel>, #tpu.dimension_semantics<arbitrary>], iteration_bounds = array<i64: 2, 1, 1>, scalar_prefetch = 0 : i64, scratch_operands = 1 : i64, tpu.core_type = #tpu.core_type<tc>, window_params = [{transform_indices = @transform_0, window_bounds = array<i64: 1, 4, 2, 128>}, {transform_indices = @transform_1, window_bounds = array<i64: 1, 1, 2, 128>}, {transform_indices = @transform_2, window_bounds = array<i64: 1, 1, 1, 1>}]} {
    %c0_i32 = arith.constant 0 : i32
    %0 = arith.cmpi eq, %arg2, %c0_i32 : i32
    %1 = arith.extui %0 : i1 to i32
    %c0_i32_0 = arith.constant 0 : i32
    %2 = arith.cmpi ne, %1, %c0_i32_0 : i32
    scf.if %2 {
      %cst_47 = arith.constant 0.000000e+00 : f32
      %74 = vector.broadcast %cst_47 : f32 to vector<2x128xf32>
      %c0_48 = arith.constant 0 : index
      %c0_49 = arith.constant 0 : index
      %75 = vector.load %arg6[%c0_48, %c0_49] : memref<2x128xf32, #tpu.memory_space<vmem>>, vector<2x128xf32>
      tpu.vector_store %arg6[%c0_48, %c0_49], %74 {strides = array<i32>} : memref<2x128xf32, #tpu.memory_space<vmem>>, vector<2x128xf32>,
    } else {
    }
    %c0 = arith.constant 0 : index
    %c0_1 = arith.constant 0 : index
    %c0_2 = arith.constant 0 : index
    %c0_3 = arith.constant 0 : index
    %3 = vector.load %arg4[%c0, %c0_1, %c0_2, %c0_3] : memref<1x1x2x128xi32, #tpu.memory_space<vmem>>, vector<1x1x2x128xi32>
    %4 = vector.shape_cast %3 : vector<1x1x2x128xi32> to vector<2x128xi32>
    %c0_4 = arith.constant 0 : index
    %c0_5 = arith.constant 0 : index
    %c0_6 = arith.constant 0 : index
    %c0_7 = arith.constant 0 : index
    %5 = vector.load %arg3[%c0_4, %c0_5, %c0_6, %c0_7] : memref<1x4x2x128xf32, #tpu.memory_space<vmem>>, vector<1x1x2x128xf32>
    %6 = vector.shape_cast %5 : vector<1x1x2x128xf32> to vector<2x128xf32>
    %c0_8 = arith.constant 0 : index
    %c1 = arith.constant 1 : index
    %c0_9 = arith.constant 0 : index
    %c0_10 = arith.constant 0 : index
    %7 = vector.load %arg3[%c0_8, %c1, %c0_9, %c0_10] : memref<1x4x2x128xf32, #tpu.memory_space<vmem>>, vector<1x1x2x128xf32>
    %8 = vector.shape_cast %7 : vector<1x1x2x128xf32> to vector<2x128xf32>
    %9 = arith.maximumf %6, %8 : vector<2x128xf32>
    %c0_11 = arith.constant 0 : index
    %c2 = arith.constant 2 : index
    %c0_12 = arith.constant 0 : index
    %c0_13 = arith.constant 0 : index
    %10 = vector.load %arg3[%c0_11, %c2, %c0_12, %c0_13] : memref<1x4x2x128xf32, #tpu.memory_space<vmem>>, vector<1x1x2x128xf32>
    %11 = vector.shape_cast %10 : vector<1x1x2x128xf32> to vector<2x128xf32>
    %12 = arith.maximumf %9, %11 : vector<2x128xf32>
    %c0_14 = arith.constant 0 : index
    %c3 = arith.constant 3 : index
    %c0_15 = arith.constant 0 : index
    %c0_16 = arith.constant 0 : index
    %13 = vector.load %arg3[%c0_14, %c3, %c0_15, %c0_16] : memref<1x4x2x128xf32, #tpu.memory_space<vmem>>, vector<1x1x2x128xf32>
    %14 = vector.shape_cast %13 : vector<1x1x2x128xf32> to vector<2x128xf32>
    %15 = arith.maximumf %12, %14 : vector<2x128xf32>
    %c0_17 = arith.constant 0 : index
    %c0_18 = arith.constant 0 : index
    %c0_19 = arith.constant 0 : index
    %c0_20 = arith.constant 0 : index
    %16 = vector.load %arg3[%c0_17, %c0_18, %c0_19, %c0_20] : memref<1x4x2x128xf32, #tpu.memory_space<vmem>>, vector<1x1x2x128xf32>
    %17 = vector.shape_cast %16 : vector<1x1x2x128xf32> to vector<2x128xf32>
    %18 = arith.subf %17, %15 : vector<2x128xf32>
    %19 = math.exp %18 : vector<2x128xf32>
    %c0_i32_21 = arith.constant 0 : i32
    %20 = vector.broadcast %c0_i32_21 : i32 to vector<2x128xi32>
    %21 = arith.cmpi eq, %4, %20 : vector<2x128xi32>
    %cst = arith.constant 0.000000e+00 : f32
    %22 = vector.broadcast %cst : f32 to vector<2x128xf32>
    %23 = arith.select %21, %17, %22 : vector<2x128xi1>, vector<2x128xf32>
    %cst_22 = arith.constant 1.000000e-01 : f32
    %cst_23 = arith.constant 0.000000e+00 : f32
    %24 = vector.broadcast %cst_22 : f32 to vector<2x128xf32>
    %25 = vector.broadcast %cst_23 : f32 to vector<2x128xf32>
    %26 = arith.select %21, %24, %25 : vector<2x128xi1>, vector<2x128xf32>
    %c0_24 = arith.constant 0 : index
    %c1_25 = arith.constant 1 : index
    %c0_26 = arith.constant 0 : index
    %c0_27 = arith.constant 0 : index
    %27 = vector.load %arg3[%c0_24, %c1_25, %c0_26, %c0_27] : memref<1x4x2x128xf32, #tpu.memory_space<vmem>>, vector<1x1x2x128xf32>
    %28 = vector.shape_cast %27 : vector<1x1x2x128xf32> to vector<2x128xf32>
    %29 = arith.subf %28, %15 : vector<2x128xf32>
    %30 = math.exp %29 : vector<2x128xf32>
    %31 = arith.addf %19, %30 : vector<2x128xf32>
    %c1_i32 = arith.constant 1 : i32
    %32 = vector.broadcast %c1_i32 : i32 to vector<2x128xi32>
    %33 = arith.cmpi eq, %4, %32 : vector<2x128xi32>
    %34 = arith.select %33, %28, %23 : vector<2x128xi1>, vector<2x128xf32>
    %cst_28 = arith.constant 2.000000e-01 : f32
    %35 = vector.broadcast %cst_28 : f32 to vector<2x128xf32>
    %36 = arith.select %33, %35, %26 : vector<2x128xi1>, vector<2x128xf32>
    %c0_29 = arith.constant 0 : index
    %c2_30 = arith.constant 2 : index
    %c0_31 = arith.constant 0 : index
    %c0_32 = arith.constant 0 : index
    %37 = vector.load %arg3[%c0_29, %c2_30, %c0_31, %c0_32] : memref<1x4x2x128xf32, #tpu.memory_space<vmem>>, vector<1x1x2x128xf32>
    %38 = vector.shape_cast %37 : vector<1x1x2x128xf32> to vector<2x128xf32>
    %39 = arith.subf %38, %15 : vector<2x128xf32>
    %40 = math.exp %39 : vector<2x128xf32>
    %41 = arith.addf %31, %40 : vector<2x128xf32>
    %c2_i32 = arith.constant 2 : i32
    %42 = vector.broadcast %c2_i32 : i32 to vector<2x128xi32>
    %43 = arith.cmpi eq, %4, %42 : vector<2x128xi32>
    %44 = arith.select %43, %38, %34 : vector<2x128xi1>, vector<2x128xf32>
    %cst_33 = arith.constant 3.000000e-01 : f32
    %45 = vector.broadcast %cst_33 : f32 to vector<2x128xf32>
    %46 = arith.select %43, %45, %36 : vector<2x128xi1>, vector<2x128xf32>
    %c0_34 = arith.constant 0 : index
    %c3_35 = arith.constant 3 : index
    %c0_36 = arith.constant 0 : index
    %c0_37 = arith.constant 0 : index
    %47 = vector.load %arg3[%c0_34, %c3_35, %c0_36, %c0_37] : memref<1x4x2x128xf32, #tpu.memory_space<vmem>>, vector<1x1x2x128xf32>
    %48 = vector.shape_cast %47 : vector<1x1x2x128xf32> to vector<2x128xf32>
    %49 = arith.subf %48, %15 : vector<2x128xf32>
    %50 = math.exp %49 : vector<2x128xf32>
    %51 = arith.addf %41, %50 : vector<2x128xf32>
    %c3_i32 = arith.constant 3 : i32
    %52 = vector.broadcast %c3_i32 : i32 to vector<2x128xi32>
    %53 = arith.cmpi eq, %4, %52 : vector<2x128xi32>
    %54 = arith.select %53, %48, %44 : vector<2x128xi1>, vector<2x128xf32>
    %cst_38 = arith.constant 4.000000e-01 : f32
    %55 = vector.broadcast %cst_38 : f32 to vector<2x128xf32>
    %56 = arith.select %53, %55, %46 : vector<2x128xi1>, vector<2x128xf32>
    %57 = arith.subf %54, %15 : vector<2x128xf32>
    %58 = math.log %51 : vector<2x128xf32>
    %59 = arith.subf %57, %58 : vector<2x128xf32>
    %60 = math.exp %59 : vector<2x128xf32>
    %61 = arith.mulf %59, %56 : vector<2x128xf32>
    %cst_39 = arith.constant 1.000000e+00 : f32
    %62 = vector.broadcast %cst_39 : f32 to vector<2x128xf32>
    %63 = arith.subf %62, %60 : vector<2x128xf32>
    %64 = arith.mulf %63, %63 : vector<2x128xf32>
    %cst_40 = arith.constant 0.000000e+00 : f32
    %65 = vector.broadcast %cst_40 : f32 to vector<2x128xf32>
    %66 = arith.subf %65, %64 : vector<2x128xf32>
    %67 = arith.mulf %66, %61 : vector<2x128xf32>
    %c0_41 = arith.constant 0 : index
    %c0_42 = arith.constant 0 : index
    %68 = vector.load %arg6[%c0_41, %c0_42] : memref<2x128xf32, #tpu.memory_space<vmem>>, vector<2x128xf32>
    %69 = arith.addf %68, %67 : vector<2x128xf32>
    %c0_43 = arith.constant 0 : index
    %c0_44 = arith.constant 0 : index
    %70 = vector.load %arg6[%c0_43, %c0_44] : memref<2x128xf32, #tpu.memory_space<vmem>>, vector<2x128xf32>
    tpu.vector_store %arg6[%c0_43, %c0_44], %69 {strides = array<i32>} : memref<2x128xf32, #tpu.memory_space<vmem>>, vector<2x128xf32>,
    %c0_i32_45 = arith.constant 0 : i32
    %71 = arith.cmpi eq, %arg2, %c0_i32_45 : i32
    %72 = arith.extui %71 : i1 to i32
    %c0_i32_46 = arith.constant 0 : i32
    %73 = arith.cmpi ne, %72, %c0_i32_46 : i32
    scf.if %73 {
      %c0_47 = arith.constant 0 : index
      %c0_48 = arith.constant 0 : index
      %74 = vector.load %arg6[%c0_47, %c0_48] : memref<2x128xf32, #tpu.memory_space<vmem>>, vector<2x128xf32>
      %cst_49 = arith.constant dense<0.000000e+00> : vector<128xf32>
      %75 = vector.multi_reduction <add>, %74, %cst_49 [0] : vector<2x128xf32> to vector<128xf32>
      %76 = vector.shape_cast %75 : vector<128xf32> to vector<1x128xf32>
      %cst_50 = arith.constant dense<0.000000e+00> : vector<1xf32>
      %77 = vector.multi_reduction <add>, %76, %cst_50 [1] : vector<1x128xf32> to vector<1xf32>
      %78 = vector.shape_cast %77 : vector<1xf32> to vector<1x1xf32>
      %c0_51 = arith.constant 0 : index
      %c0_52 = arith.constant 0 : index
      %c0_53 = arith.constant 0 : index
      %c0_54 = arith.constant 0 : index
      %79 = vector.load %arg5[%c0_51, %c0_52, %c0_53, %c0_54] : memref<1x1x1x1xf32, #tpu.memory_space<vmem>>, vector<1x1x1x1xf32>
      %80 = vector.shape_cast %79 : vector<1x1x1x1xf32> to vector<1x1xf32>
      %81 = vector.shape_cast %78 : vector<1x1xf32> to vector<1x1x1x1xf32>
      tpu.vector_store %arg5[%c0_51, %c0_52, %c0_53, %c0_54], %81 {strides = array<i32>} : memref<1x1x1x1xf32, #tpu.memory_space<vmem>>, vector<1x1x1x1xf32>,
    } else {
    }
    return
  }
  func.func @transform_0(%arg0: i32, %arg1: i32, %arg2: i32) -> (i32, i32, i32, i32) {
    %c1_i32 = arith.constant 1 : i32
    %0 = arith.muli %arg1, %c1_i32 : i32
    %1 = arith.addi %0, %arg2 : i32
    %c0_i32 = arith.constant 0 : i32
    %c0_i32_0 = arith.constant 0 : i32
    %c0_i32_1 = arith.constant 0 : i32
    return %arg0, %c0_i32, %1, %c0_i32_0 : i32, i32, i32, i32
  }
  func.func @transform_1(%arg0: i32, %arg1: i32, %arg2: i32) -> (i32, i32, i32, i32) {
    %c1_i32 = arith.constant 1 : i32
    %0 = arith.muli %arg1, %c1_i32 : i32
    %1 = arith.addi %0, %arg2 : i32
    %c0_i32 = arith.constant 0 : i32
    %c0_i32_0 = arith.constant 0 : i32
    %c0_i32_1 = arith.constant 0 : i32
    return %arg0, %c0_i32, %1, %c0_i32_0 : i32, i32, i32, i32
  }
  func.func @transform_2(%arg0: i32, %arg1: i32, %arg2: i32) -> (i32, i32, i32, i32) {
    %c0_i32 = arith.constant 0 : i32
    %c0_i32_0 = arith.constant 0 : i32
    %c0_i32_1 = arith.constant 0 : i32
    return %arg0, %arg1, %c0_i32, %c0_i32_0 : i32, i32, i32, i32
  }
}

</mosaic_0001>

<llo_original>
// kernel: tpu_custom_call.1
$region0: #{tpu_custom_call.1}
  #allocation0 [shape = 'u32[]', space=smem, size = 0x4, offset = 0x4, fixed_abs, tag = 'smem constant byte address 0x4 - core index']
  #allocation1 [shape = 'u32[144,128]{1,0:T(1,128)}', space=vmem, size = 0x12000, scoped, tag = 'internal scratch']
  #allocation2 [shape = 'f32[2,128]{1,0:T(2,128)}', space=vmem, size = 0x400, scoped, tag = 'scratch operand']
  %s0 = inlined_call_operand.hbm [shape: f32[2,4,2,128], index: 0, kind: input, shape index: {}]
  %s1 = inlined_call_operand.hbm [shape: s32[2,1,2,128], index: 1, kind: input, shape index: {}]
  %s2 = inlined_call_operand.vmem [shape: f32[2,1,1,1], index: 2, kind: output, shape index: {}]
  %s3 = sld [smem:[#allocation0]]
  $region57: #{tpu_custom_call.1} parent=0
    _
  %s5 = ssub.s32 1, %s3
  %s6 = scalar_select 0, %s5, %s3
  $region1: #{tpu_custom_call.1} parent=0
    #allocation3 [shape = 'u8[8192]{0}', space=vmem, size = 0x2000, scoped, tag = 'input window, operand 0']
    #allocation4 [shape = 's32[2]{0}', space=sflag, size = 0x8, scoped, tag = 'scoped memory for tpu_custom_call.1']
    #allocation5 [shape = 'u8[2048]{0}', space=vmem, size = 0x800, scoped, tag = 'input window, operand 1']
    #allocation6 [shape = 's32[2]{0}', space=sflag, size = 0x8, scoped, tag = 'scoped memory for tpu_custom_call.1']
    %7 = vsyncpa [#allocation4], 0
    %s8 = scalar_lea.sflag [#allocation4], 1
    %9 = vsyncpa %s8, 0
    %10 = vsyncpa [#allocation6], 0
    %s11 = scalar_lea.sflag [#allocation6], 1
    %12 = vsyncpa %s11, 0
    loop: start=0, step=1, limit=4
    $region2: #{tpu_custom_call.1} parent=1 // loop_pre_header
      _
    $region3: #{tpu_custom_call.1} parent=1 // loop_header
      %s14 = sphi 0, %s18
      %p15 = scmp.ge.s32.totalorder %s14, 4
      %s21 = sphi 0, %s40
      %s22 = sphi 0, %s36
      %s23 = sphi 0, %s32
      %s24 = sphi 0, %s21
      %s25 = sphi 0, %s22
      %s26 = sphi 0, %s23
      %s27 = sphi 0, %s24
      %s28 = sphi 0, %s25
      %s29 = sphi 0, %s26
      %s47 = sphi 0, %s49
      %s50 = sphi 0, %s47
      %s51 = sphi 0, %s50
      %s67 = sphi 0, %s51
      %s77 = sphi 0, %s79
      %s80 = sphi 0, %s77
      %s81 = sphi 0, %s80
      %s97 = sphi 0, %s81
      %s105 = sphi 0, %s107
      %s108 = sphi 0, %s105
      %s109 = sphi 0, %s108
      %s125 = sphi 0, %s109
    $region4: #{tpu_custom_call.1} parent=1 // loop_header_branch
      %17 = sbr.rel (%p15) target = $region8
    $region5: #{tpu_custom_call.1} parent=1 // loop_body
      %s19 = ssub.s32 %s14, 1
      %s20 = ssub.s32 %s14, 2
      %s30 = sadd.s32 1, %s23
      %p31 = scmp.ge.s32.totalorder %s30, 1
      %s32 = scalar_select %p31, 0, %s30
      %s33 = sadd.s32 1, %s22
      %s34 = scalar_select %p31, %s33, %s22
      %p35 = scmp.ge.s32.totalorder %s34, 1
      %s36 = scalar_select %p35, 0, %s34
      %s37 = sadd.s32 1, %s21
      %s38 = scalar_select %p35, %s37, %s21
      %p39 = scmp.ge.s32.totalorder %s38, 2
      %s40 = scalar_select %p39, 0, %s38
      %s41 = sadd.s32 %s22, %s23
      %s42 = sadd.s32 %s36, %s32
      %s43 = ssub.s32 %s21, %s40
      %s44 = ssub.s32 %s41, %s42
      %s45 = sor.u32 %s43, %s44
      %p46 = scmp.eq.s32.totalorder %s45, 0
      %s48 = sadd.s32 %s47, 1
      %s49 = scalar_select %p46, %s47, %s48
      %p52 = pneg %p46
      %p53 = scmp.eq.s32.totalorder %s14, 1
      %p54 = por %p52, %p53
      %p55 = scmp.ne.s32.totalorder %s47, %s50
      %p56 = scmp.eq.s32.totalorder %s14, 0
      %p57 = por %p55, %p56
      %p58 = scmp.ne.s32.totalorder %s47, %s50
      %p59 = scmp.eq.s32.totalorder %s19, 1
      %p60 = por %p58, %p59
      %p61 = scmp.ne.s32.totalorder %s50, %s51
      %p62 = scmp.eq.s32.totalorder %s19, 0
      %p63 = por %p61, %p62
      %p64 = scmp.ne.s32.totalorder %s50, %s51
      %p65 = scmp.eq.s32.totalorder %s20, 1
      %p66 = por %p64, %p65
      %p68 = scmp.ne.s32.totalorder %s51, %s67
      %p69 = scmp.eq.s32.totalorder %s20, 0
      %p70 = por %p68, %p69
      %s71 = sadd.s32 %s22, %s23
      %s72 = sadd.s32 %s36, %s32
      %s73 = ssub.s32 %s21, %s40
      %s74 = ssub.s32 %s71, %s72
      %s75 = sor.u32 %s73, %s74
      %p76 = scmp.eq.s32.totalorder %s75, 0
      %s78 = sadd.s32 %s77, 1
      %s79 = scalar_select %p76, %s77, %s78
      %p82 = pneg %p76
      %p83 = scmp.eq.s32.totalorder %s14, 1
      %p84 = por %p82, %p83
      %p85 = scmp.ne.s32.totalorder %s77, %s80
      %p86 = scmp.eq.s32.totalorder %s14, 0
      %p87 = por %p85, %p86
      %p88 = scmp.ne.s32.totalorder %s77, %s80
      %p89 = scmp.eq.s32.totalorder %s19, 1
      %p90 = por %p88, %p89
      %p91 = scmp.ne.s32.totalorder %s80, %s81
      %p92 = scmp.eq.s32.totalorder %s19, 0
      %p93 = por %p91, %p92
      %p94 = scmp.ne.s32.totalorder %s80, %s81
      %p95 = scmp.eq.s32.totalorder %s20, 1
      %p96 = por %p94, %p95
      %p98 = scmp.ne.s32.totalorder %s81, %s97
      %p99 = scmp.eq.s32.totalorder %s20, 0
      %p100 = por %p98, %p99
      %s101 = ssub.s32 %s21, %s40
      %s102 = ssub.s32 %s22, %s36
      %s103 = sor.u32 %s101, %s102
      %p104 = scmp.eq.s32.totalorder %s103, 0
      %s106 = sadd.s32 %s105, 1
      %s107 = scalar_select %p104, %s105, %s106
      %p110 = pneg %p104
      %p111 = scmp.eq.s32.totalorder %s14, 1
      %p112 = por %p110, %p111
      %p113 = scmp.ne.s32.totalorder %s105, %s108
      %p114 = scmp.eq.s32.totalorder %s14, 0
      %p115 = por %p113, %p114
      %p116 = scmp.ne.s32.totalorder %s105, %s108
      %p117 = scmp.eq.s32.totalorder %s19, 1
      %p118 = por %p116, %p117
      %p119 = scmp.ne.s32.totalorder %s108, %s109
      %p120 = scmp.eq.s32.totalorder %s19, 0
      %p121 = por %p119, %p120
      %p122 = scmp.ne.s32.totalorder %s108, %s109
      %p123 = scmp.eq.s32.totalorder %s20, 1
      %p124 = por %p122, %p123
      %p126 = scmp.ne.s32.totalorder %s109, %s125
      %p127 = scmp.eq.s32.totalorder %s20, 0
      %p128 = por %p126, %p127
      %p129 = scmp.le.s32.totalorder 1, %s14
      %p130 = scmp.lt.s32.totalorder %s14, 3
      %p131 = pnand %p129, %p130
      %p132 = pneg %p131
      // Predicated region
      $region9: #{tpu_custom_call.1} parent=5 // pred_check
        _
      $region10: #{tpu_custom_call.1} parent=5 // pred_check_branch
        %134 = sbr.rel (%p131) target = $region12
      $region11: #{tpu_custom_call.1} parent=5 // pred_region
        %s135 = ssub.s32 %s14, 1
      $region12: #{tpu_custom_call.1} parent=5 // pred_fallthru
        _
      %p136 = scmp.lt.s32.totalorder %s14, 2
      // Predicated region
      $region13: #{tpu_custom_call.1} parent=5 // pred_check
        %p137 = pneg %p136
      $region14: #{tpu_custom_call.1} parent=5 // pred_check_branch
        %139 = sbr.rel (%p137) target = $region16
      $region15: #{tpu_custom_call.1} parent=5 // pred_region
        // Predicated region
        $region17: #{tpu_custom_call.1} parent=15 // pred_check
          %p140 = pneg %p57
        $region18: #{tpu_custom_call.1} parent=15 // pred_check_branch
          %142 = sbr.rel (%p140) target = $region20
        $region19: #{tpu_custom_call.1} parent=15 // pred_region
          %s143 = sand.u32 %s47, 1
          %s144 = scalar_lea.sflag [#allocation4], %s143
          %s145 = sand.u32 %s47, 1
          %s146 = smul.addr %s145, 8
          %s147 = scalar_lea.vmem [#allocation3], %s146
          %s148 = sadd.s32 %s22, %s23
          %s150 = ssub.s32 128, 128
          %151 = vsyncadd %s144, %s150
          %s152 = smul.addr %s21, 4
          %s153 = sadd.s32 %s148, %s152
          %s154 = smul.addr %s153, 32
          %s155 = scalar_lea.hbm %s0, %s154
          %s156 = sshll.u32 %s147, 4
          %s157 = int_to_ptr.vmem [resolvable:$true] %s156
          %162 = dma.hbm_to_vmem [thread:$0]  %s155, 128, %s157, %s144, 32, 32, 2
        $region20: #{tpu_custom_call.1} parent=15 // pred_fallthru
          _
        // Predicated region
        $region21: #{tpu_custom_call.1} parent=15 // pred_check
          %p163 = pneg %p87
        $region22: #{tpu_custom_call.1} parent=15 // pred_check_branch
          %165 = sbr.rel (%p163) target = $region24
        $region23: #{tpu_custom_call.1} parent=15 // pred_region
          %s166 = sand.u32 %s77, 1
          %s167 = scalar_lea.sflag [#allocation6], %s166
          %s168 = sand.u32 %s77, 1
          %s169 = smul.addr %s168, 2
          %s170 = scalar_lea.vmem [#allocation5], %s169
          %s171 = sadd.s32 %s22, %s23
          %s173 = ssub.s32 32, 32
          %174 = vsyncadd %s167, %s173
          %s175 = sadd.s32 %s171, %s21
          %s176 = smul.addr %s175, 32
          %s177 = scalar_lea.hbm %s1, %s176
          %s179 = sshll.u32 %s170, 4
          %s180 = int_to_ptr.vmem [resolvable:$true] %s179
          %182 = dma.hbm_to_vmem [thread:$0]  %s177, 32, %s180, %s167
        $region24: #{tpu_custom_call.1} parent=15 // pred_fallthru
          _
      $region16: #{tpu_custom_call.1} parent=5 // pred_fallthru
        _
      %p183 = scmp.le.s32.totalorder 1, %s14
      %p184 = scmp.lt.s32.totalorder %s14, 3
      %p185 = pnand %p183, %p184
      %p186 = pneg %p185
      // Predicated region
      $region25: #{tpu_custom_call.1} parent=5 // pred_check
        _
      $region26: #{tpu_custom_call.1} parent=5 // pred_check_branch
        %188 = sbr.rel (%p185) target = $region28
      $region27: #{tpu_custom_call.1} parent=5 // pred_region
        %s189 = ssub.s32 %s14, 1
        %s190 = sand.u32 %s50, 1
        %s191 = scalar_lea.sflag [#allocation4], %s190
        %s192 = sand.u32 %s50, 1
        %s193 = smul.addr %s192, 8
        %s194 = scalar_lea.vmem [#allocation3], %s193
        // Predicated region
        $region29: #{tpu_custom_call.1} parent=27 // pred_check
          %p195 = pneg %p63
        $region30: #{tpu_custom_call.1} parent=27 // pred_check_branch
          %197 = sbr.rel (%p195) target = $region32
        $region31: #{tpu_custom_call.1} parent=27 // pred_region
          %198 = dma.done %s191, 128
        $region32: #{tpu_custom_call.1} parent=27 // pred_fallthru
          _
        %s199 = sand.u32 %s80, 1
        %s200 = scalar_lea.sflag [#allocation6], %s199
        %s201 = sand.u32 %s80, 1
        %s202 = smul.addr %s201, 2
        %s203 = scalar_lea.vmem [#allocation5], %s202
        // Predicated region
        $region33: #{tpu_custom_call.1} parent=27 // pred_check
          %p204 = pneg %p93
        $region34: #{tpu_custom_call.1} parent=27 // pred_check_branch
          %206 = sbr.rel (%p204) target = $region36
        $region35: #{tpu_custom_call.1} parent=27 // pred_region
          %207 = dma.done %s200, 32
        $region36: #{tpu_custom_call.1} parent=27 // pred_fallthru
          _
        %s208 = sand.u32 %s50, 1
        %s209 = scalar_lea.sflag [#allocation4], %s208
        %s210 = sand.u32 %s50, 1
        %s211 = smul.addr %s210, 8
        %s212 = scalar_lea.vmem [#allocation3], %s211
        %p213 = pneg %p63
        %p214 = pneg %p60
        %s215 = sand.u32 %s80, 1
        %s216 = scalar_lea.sflag [#allocation6], %s215
        %s217 = sand.u32 %s80, 1
        %s218 = smul.addr %s217, 2
        %s219 = scalar_lea.vmem [#allocation5], %s218
        %p220 = pneg %p93
        %p221 = pneg %p90
        %p222 = pneg %p121
        %p223 = pneg %p118
        %p224 = scmp.lt.s32.totalorder %s24, 1
        %s225 = scalar_select %p224, %s24, 1
        %p226 = scmp.lt.s32.totalorder %s25, 0
        %s227 = scalar_select %p226, %s25, 0
        %s228 = sadd.s32 %s227, %s225
        %s229 = scalar_lea.vmem %s2, %s228
        %s230 = sadd.s32 %s25, %s26
        %s231 = sadd.s32 %s25, %s26
        %p232 = scmp.lt.s32.totalorder %s24, 1
        %s233 = scalar_select %p232, %s24, 1
        %p234 = scmp.lt.s32.totalorder %s25, 0
        %s235 = scalar_select %p234, %s25, 0
        %s236 = sadd.s32 %s235, %s233
        %s237 = scalar_lea.vmem %s2, %s236
        %p238 = scmp.eq.s32.totalorder %s26, 0
        // Predicated region
        $region37: #{tpu_custom_call.1} parent=27 // pred_check
          %p239 = pneg %p238
        $region38: #{tpu_custom_call.1} parent=27 // pred_check_branch
          %241 = sbr.rel (%p239) target = $region40
        $region39: #{tpu_custom_call.1} parent=27 // pred_region
          %242 = vst [vmem:[#allocation2] sm:$0x3] 0.0
        $region40: #{tpu_custom_call.1} parent=27 // pred_fallthru
          _
        %v243 = vld [vmem:[%s203] sm:$0x3]
        %v244 = vld [vmem:[%s194] sm:$0x3]
        %s245 = scalar_lea.vmem %s194, 2 [#allocation3]
        %v246 = vld [vmem:[%s245] sm:$0x3]
        %v247 = vmax.f32 %v244, %v246
        %s248 = scalar_lea.vmem %s194, 4 [#allocation3]
        %v249 = vld [vmem:[%s248] sm:$0x3]
        %v250 = vmax.f32 %v247, %v249
        %s251 = scalar_lea.vmem %s194, 6 [#allocation3]
        %v252 = vld [vmem:[%s251] sm:$0x3]
        %v253 = vmax.f32 %v250, %v252
        %v254 = vsub.f32 %v244, %v253
        %v255 = vmul.f32 %v254, 1.442695
        %v256 = vpow.pop %v255
        %vm257 = vcmp.eq.s32.totalorder %v243, 0
        %v258 = vsel %vm257, %v244, 0.0
        %v259 = vsel %vm257, 0.1, 0.0
        %v260 = vsub.f32 %v246, %v253
        %v261 = vmul.f32 %v260, 1.442695
        %v262 = vpow.pop %v261
        %v263 = vadd.f32 %v256, %v262
        %vm264 = vcmp.eq.s32.totalorder %v243, 1
        %v265 = vsel %vm264, %v246, %v258
        %v266 = vsel %vm264, 0.2, %v259
        %v267 = vsub.f32 %v249, %v253
        %v268 = vmul.f32 %v267, 1.442695
        %v269 = vpow.pop %v268
        %v270 = vadd.f32 %v263, %v269
        %vm271 = vcmp.eq.s32.totalorder %v243, 2
        %v272 = vsel %vm271, %v249, %v265
        %v273 = vsel %vm271, 0.3, %v266
        %v274 = vsub.f32 %v252, %v253
        %v275 = vmul.f32 %v274, 1.442695
        %v276 = vpow.pop %v275
        %v277 = vadd.f32 %v270, %v276
        %vm278 = vcmp.eq.s32.totalorder %v243, 3
        %v279 = vsel %vm278, %v252, %v272
        %v280 = vsel %vm278, 0.4, %v273
        %v281 = vsub.f32 %v279, %v253
        %v282 = vlog2.pop %v277
        %v283 = vmul.f32 %v282, 0.6931472
        %v284 = vsub.f32 %v281, %v283
        %v285 = vmul.f32 %v284, 1.442695
        %v286 = vpow.pop %v285
        %v287 = vmul.f32 %v284, %v280
        %v288 = vsub.f32 1.0, %v286
        %v289 = vmul.f32 %v288, %v288
        %v290 = vsub.f32 0.0, %v289
        %v291 = vmul.f32 %v290, %v287
        %v292 = vld [vmem:[#allocation2] sm:$0x3]
        %v293 = vadd.f32 %v292, %v291
        %294 = vst [vmem:[#allocation2] sm:$0x3] %v293
        // Predicated region
        $region41: #{tpu_custom_call.1} parent=27 // pred_check
          %p295 = pneg %p238
        $region42: #{tpu_custom_call.1} parent=27 // pred_check_branch
          %297 = sbr.rel (%p295) target = $region44
        $region43: #{tpu_custom_call.1} parent=27 // pred_region
          %v298 = vld [vmem:[#allocation2] sm:$0x3]
          %vm299 = vcmask 1041408
          %v300 = vsel %vm299, %v298, 0.0
          %v301 = vrot.slane %v300, 4
          %v302 = vadd.f32 %v300, %v301
          %v303 = vrot.slane %v302, 2
          %v304 = vadd.f32 %v302, %v303
          %v305 = vrot.slane %v304, 1
          %v306 = vadd.f32 %v304, %v305
          %307 = vadd.xlane.f32.xlu0 %v306
          %v308 = vpop.xlane.xlu0 %307
          %vm309 = vcmask 0
          %310 = vst.msk [vmem:[%s237] sm:$0x1] %vm309, %v308
        $region44: #{tpu_custom_call.1} parent=27 // pred_fallthru
          _
        %p311 = scmp.lt.s32.totalorder %s24, 1
        %s312 = scalar_select %p311, %s24, 1
        %p313 = scmp.lt.s32.totalorder %s25, 0
        %s314 = scalar_select %p313, %s25, 0
        %s315 = sadd.s32 %s314, %s312
        %s316 = scalar_lea.vmem %s2, %s315
        // Predicated region
        $region45: #{tpu_custom_call.1} parent=27 // pred_check
          %p317 = pneg %p118
        $region46: #{tpu_custom_call.1} parent=27 // pred_check_branch
          %319 = sbr.rel (%p317) target = $region48
        $region47: #{tpu_custom_call.1} parent=27 // pred_region
          _
        $region48: #{tpu_custom_call.1} parent=27 // pred_fallthru
          _
      $region28: #{tpu_custom_call.1} parent=5 // pred_fallthru
        _
      %p320 = scmp.le.s32.totalorder 2, %s14
      // Predicated region
      $region49: #{tpu_custom_call.1} parent=5 // pred_check
        %p321 = pneg %p320
      $region50: #{tpu_custom_call.1} parent=5 // pred_check_branch
        %323 = sbr.rel (%p321) target = $region52
      $region51: #{tpu_custom_call.1} parent=5 // pred_region
        %s324 = ssub.s32 %s14, 2
        // Predicated region
        $region53: #{tpu_custom_call.1} parent=51 // pred_check
          %p325 = pneg %p124
        $region54: #{tpu_custom_call.1} parent=51 // pred_check_branch
          %327 = sbr.rel (%p325) target = $region56
        $region55: #{tpu_custom_call.1} parent=51 // pred_region
          %p328 = scmp.lt.s32.totalorder %s27, 1
          %s329 = scalar_select %p328, %s27, 1
          %p330 = scmp.lt.s32.totalorder %s28, 0
          %s331 = scalar_select %p330, %s28, 0
          %s332 = sadd.s32 %s331, %s329
          %s333 = scalar_lea.vmem %s2, %s332
        $region56: #{tpu_custom_call.1} parent=51 // pred_fallthru
          _
      $region52: #{tpu_custom_call.1} parent=5 // pred_fallthru
        _
    $region6: #{tpu_custom_call.1} parent=1 // loop_footer
      %s18 = sadd.s32 1, %s14
    $region7: #{tpu_custom_call.1} parent=1 // loop_footer_branch
      %13 = sbr.rel target = $region3
    $region8: #{tpu_custom_call.1} parent=1 // loop_exit
      _
    %334 = vsyncpa [#allocation4], 1
    %s335 = scalar_lea.sflag [#allocation4], 1
    %336 = vsyncpa %s335, 1
    %337 = vsyncpa [#allocation6], 1
    %s338 = scalar_lea.sflag [#allocation6], 1
    %339 = vsyncpa %s338, 1

</llo_original>
